<compile_context>
chip_gen: v7x
topology: tpu7x:2x2x1
jax: 0.10.0
libtpu: 0.0.40
codegen_flags: <defaults>
</compile_context>

<pallas_src>
import jax
import jax.numpy as jnp
from jax import lax
from jax.experimental import pallas as pl
from jax.experimental.pallas import tpu as pltpu


def _round_up(v, m):
    return ((v + m - 1) // m) * m


# --------------------------------------------------------------------------- #
# Kernels
# --------------------------------------------------------------------------- #
def _linear_single_kernel(x_ref, w_ref, b_ref, o_ref):
    """o = x @ W.T + b, single shot (everything resident in VMEM)."""
    acc = lax.dot_general(
        x_ref[...], w_ref[...],
        dimension_numbers=(((1,), (1,)), ((), ())),   # contract K of x with K of W
        preferred_element_type=jnp.float32,
    )
    o_ref[...] = (acc + b_ref[...]).astype(o_ref.dtype)


def _linear_tiled_kernel(x_ref, w_ref, b_ref, o_ref, acc_ref):
    """Tiled o = x @ W.T + b with f32 accumulation over the K grid axis."""
    k = pl.program_id(2)

    @pl.when(k == 0)
    def _():
        acc_ref[...] = jnp.zeros_like(acc_ref)

    acc_ref[...] += lax.dot_general(
        x_ref[...], w_ref[...],
        dimension_numbers=(((1,), (1,)), ((), ())),
        preferred_element_type=jnp.float32,
    )

    @pl.when(k == pl.num_programs(2) - 1)
    def _():
        o_ref[...] = (acc_ref[...] + b_ref[...]).astype(o_ref.dtype)


# --------------------------------------------------------------------------- #
# Wrapper
# --------------------------------------------------------------------------- #
def linear_pallas(x, weight, bias, *, block_m=256, block_n=256, block_k=2048,
                  single_shot_bytes=6 << 20):
    """F.linear: x (M,K), weight (N,K) PyTorch layout, bias (N,) -> (M,N)."""
    M, K = x.shape
    N, Kw = weight.shape
    assert K == Kw and bias.shape == (N,)
    out_dtype = x.dtype

    total_bytes = 4 * (M * K + N * K + M * N + N)
    cost = pl.CostEstimate(flops=2 * M * K * N, transcendentals=0,
                           bytes_accessed=total_bytes)

    # ---------------- small-head fast path (the real MAML workload) ----------
    if total_bytes <= single_shot_bytes:
        return pl.pallas_call(
            _linear_single_kernel,
            out_shape=jax.ShapeDtypeStruct((M, N), out_dtype),
            grid_spec=pltpu.PrefetchScalarGridSpec(
                num_scalar_prefetch=0,
                grid=(1,),
                in_specs=[
                    pl.BlockSpec((M, K), lambda i: (0, 0)),   # x, full block
                    pl.BlockSpec((N, K), lambda i: (0, 0)),   # W, PyTorch layout
                    pl.BlockSpec((1, N), lambda i: (0, 0)),   # bias row
                ],
                out_specs=pl.BlockSpec((M, N), lambda i: (0, 0)),
            ),
            compiler_params=pltpu.CompilerParams(
                dimension_semantics=("arbitrary",),
            ),
            cost_estimate=cost,
        )(x, weight, bias.reshape(1, N))

    # ---------------- large-M tiled fallback ---------------------------------
    bm = min(block_m, _round_up(M, 8))
    Mp = _round_up(M, bm)
    bn = min(block_n, _round_up(N, 128))      # keep output stores lane-dense
    Np = _round_up(N, bn)
    Kp = _round_up(K, 128)
    bk = min(block_k, Kp)
    Kp = _round_up(K, bk)

    x_p = jnp.pad(x, ((0, Mp - M), (0, Kp - K)))
    w_p = jnp.pad(weight, ((0, Np - N), (0, Kp - K)))
    b_p = jnp.pad(bias, (0, Np - N)).reshape(1, Np)

    grid = (Mp // bm, Np // bn, Kp // bk)

    itemsize = 4  # f32 everywhere
    vmem_bytes = (2 * (bm * bk + bn * bk + bn) * itemsize   # double-buffered ins
                  + 2 * bm * bn * itemsize                  # double-buffered out
                  + bm * bn * 4                             # f32 accumulator
                  + (4 << 20))                              # compiler headroom

    out = pl.pallas_call(
        _linear_tiled_kernel,
        out_shape=jax.ShapeDtypeStruct((Mp, Np), out_dtype),
        grid_spec=pltpu.PrefetchScalarGridSpec(
            num_scalar_prefetch=0,
            grid=grid,
            in_specs=[
                pl.BlockSpec((bm, bk), lambda i, j, k: (i, k)),
                pl.BlockSpec((bn, bk), lambda i, j, k: (j, k)),   # (N,K) layout
                pl.BlockSpec((1, bn), lambda i, j, k: (0, j)),
            ],
            out_specs=pl.BlockSpec((bm, bn), lambda i, j, k: (i, j)),
            scratch_shapes=[pltpu.VMEM((bm, bn), jnp.float32)],
        ),
        compiler_params=pltpu.CompilerParams(
            dimension_semantics=("parallel", "parallel", "arbitrary"),
            vmem_limit_bytes=vmem_bytes,
        ),
        cost_estimate=cost,
    )(x_p, w_p, b_p)
    return out[:M, :N]


def classifer_forward(x, params):
    """Mirrors Classifer.forward(x, params).

    v7x note: with a single small tile the second TensorCore idles; when
    evaluating multiple MAML tasks, flatten tasks x queries into the leading
    (M) dimension of x before calling so the parallel M axis has >= 2 steps.
    """
    return linear_pallas(x, params["fc.weight"], params["fc.bias"])


# --------------------------------------------------------------------------- #
# Self-test
# --------------------------------------------------------------------------- #
if __name__ == "__main__":
    key = jax.random.PRNGKey(0)
    k_x, k_w, k_b = jax.random.split(key, 3)

    # Classifer(dim=640, class_num=5): ResNet-12 MAML head, batch of 8 queries.
    dim, class_num, batch = 640, 5, 8
    x = jax.random.normal(k_x, (batch, dim), jnp.float32)
    params = {
        "fc.weight": (1.0 / jnp.sqrt(dim))
        * jax.random.normal(k_w, (class_num, dim), jnp.float32),
        "fc.bias": 0.1 * jax.random.normal(k_b, (class_num,), jnp.float32),
    }

    logits = jax.jit(classifer_forward)(x, params)
    jax.block_until_ready(logits)

    ref = (
        jnp.dot(x, params["fc.weight"].T, precision=lax.Precision.HIGHEST)
        + params["fc.bias"]
    )

    assert logits.shape == (batch, class_num), logits.shape
    assert bool(jnp.all(jnp.isfinite(logits)))
    assert jnp.allclose(logits, ref, rtol=1e-2, atol=1e-2), float(
        jnp.max(jnp.abs(logits - ref))
    )
    print("KERNEL_OK")
</pallas_src>

<mosaic_0001>
module attributes {stable_mosaic.version = 11 : i64} {
  func.func @_linear_single_kernel(%arg0: i32, %arg1: memref<8x640xf32, #tpu.memory_space<vmem>>, %arg2: memref<5x640xf32, #tpu.memory_space<vmem>>, %arg3: memref<1x5xf32, #tpu.memory_space<vmem>>, %arg4: memref<8x5xf32, #tpu.memory_space<vmem>>) attributes {dimension_semantics = [#tpu.dimension_semantics<arbitrary>], iteration_bounds = array<i64: 1>, scalar_prefetch = 0 : i64, scratch_operands = 0 : i64, tpu.core_type = #tpu.core_type<tc>, window_params = [{pipeline_mode = #tpu.pipeline_mode<synchronous>, transform_indices = @transform_0, window_bounds = array<i64: 8, 640>}, {pipeline_mode = #tpu.pipeline_mode<synchronous>, transform_indices = @transform_1, window_bounds = array<i64: 5, 640>}, {pipeline_mode = #tpu.pipeline_mode<synchronous>, transform_indices = @transform_2, window_bounds = array<i64: 1, 5>}, {pipeline_mode = #tpu.pipeline_mode<synchronous>, transform_indices = @transform_3, window_bounds = array<i64: 8, 5>}]} {
    %c0 = arith.constant 0 : index
    %c0_0 = arith.constant 0 : index
    %0 = vector.load %arg1[%c0, %c0_0] : memref<8x640xf32, #tpu.memory_space<vmem>>, vector<8x640xf32>
    %c0_1 = arith.constant 0 : index
    %c0_2 = arith.constant 0 : index
    %1 = vector.load %arg2[%c0_1, %c0_2] : memref<5x640xf32, #tpu.memory_space<vmem>>, vector<5x640xf32>
    %cst = arith.constant dense<0.000000e+00> : vector<8x5xf32>
    %2 = tpu.matmul %0, %1, %cst {dimension_numbers = #tpu.dot_dimension_numbers<[1], [1], [0], [0], [0, 0, 1, 0], [], []>} : vector<8x640xf32>, vector<5x640xf32>, vector<8x5xf32> -> vector<8x5xf32>
    %c0_3 = arith.constant 0 : index
    %c0_4 = arith.constant 0 : index
    %3 = vector.load %arg3[%c0_3, %c0_4] : memref<1x5xf32, #tpu.memory_space<vmem>>, vector<1x5xf32>
    %4 = vector.broadcast %3 : vector<1x5xf32> to vector<8x5xf32>
    %5 = arith.addf %2, %4 : vector<8x5xf32>
    %c0_5 = arith.constant 0 : index
    %c0_6 = arith.constant 0 : index
    %6 = vector.load %arg4[%c0_5, %c0_6] : memref<8x5xf32, #tpu.memory_space<vmem>>, vector<8x5xf32>
    tpu.vector_store %arg4[%c0_5, %c0_6], %5 {strides = array<i32>} : memref<8x5xf32, #tpu.memory_space<vmem>>, vector<8x5xf32>,
    return
  }
  func.func @transform_0(%arg0: i32) -> (i32, i32) {
    %c0_i32 = arith.constant 0 : i32
    %c0_i32_0 = arith.constant 0 : i32
    %c0_i32_1 = arith.constant 0 : i32
    return %c0_i32, %c0_i32_0 : i32, i32
  }
  func.func @transform_1(%arg0: i32) -> (i32, i32) {
    %c0_i32 = arith.constant 0 : i32
    %c0_i32_0 = arith.constant 0 : i32
    %c0_i32_1 = arith.constant 0 : i32
    return %c0_i32, %c0_i32_0 : i32, i32
  }
  func.func @transform_2(%arg0: i32) -> (i32, i32) {
    %c0_i32 = arith.constant 0 : i32
    %c0_i32_0 = arith.constant 0 : i32
    %c0_i32_1 = arith.constant 0 : i32
    return %c0_i32, %c0_i32_0 : i32, i32
  }
  func.func @transform_3(%arg0: i32) -> (i32, i32) {
    %c0_i32 = arith.constant 0 : i32
    %c0_i32_0 = arith.constant 0 : i32
    %c0_i32_1 = arith.constant 0 : i32
    return %c0_i32, %c0_i32_0 : i32, i32
  }
}

</mosaic_0001>

<llo_original>
// kernel: classifer_forward.1
$region0: #{classifer_forward.1}
  #allocation0 [shape = 'u32[]', space=smem, size = 0x4, offset = 0x4, fixed_abs, tag = 'smem constant byte address 0x4 - core index']
  #allocation1 [shape = 'u32[144,128]{1,0:T(1,128)}', space=vmem, size = 0x12000, scoped, tag = 'internal scratch']
  %s0 = inlined_call_operand.hbm [shape: f32[8,640], index: 0, kind: input, shape index: {}]
  %s1 = inlined_call_operand.hbm [shape: f32[5,640], index: 1, kind: input, shape index: {}]
  %s2 = inlined_call_operand.vmem [shape: f32[1,5], index: 2, kind: input, shape index: {}]
  %s3 = inlined_call_operand.hbm [shape: f32[8,5], index: 3, kind: output, shape index: {}]
  %s4 = sld [smem:[#allocation0]]
  $region30: #{classifer_forward.1} parent=0
    _
  %s6 = ssub.s32 1, %s4
  %s7 = scalar_select 0, %s6, %s4
  $region1: #{classifer_forward.1} parent=0
    #allocation2 [shape = 'u8[20480]{0}', space=vmem, size = 0x5000, scoped, tag = 'input window, operand 0, single buffered']
    #allocation3 [shape = 's32[1]{0}', space=sflag, size = 0x4, scoped, tag = 'scoped memory for classifer_forward.1']
    #allocation4 [shape = 's32[1]{0}', space=sflag, size = 0x4, scoped, tag = 'scoped memory for classifer_forward.1']
    #allocation5 [shape = 'u8[20480]{0}', space=vmem, size = 0x5000, scoped, tag = 'input window, operand 1, single buffered']
    #allocation6 [shape = 's32[1]{0}', space=sflag, size = 0x4, scoped, tag = 'scoped memory for classifer_forward.1']
    #allocation7 [shape = 'u8[4096]{0}', space=vmem, size = 0x1000, scoped, tag = 'output window, operand 0, single buffered']
    %8 = vsyncpa [#allocation3], 0
    %9 = vsyncpa [#allocation6], 0
    %10 = vsyncpa [#allocation4], 0
    // Predicated region
    $region2: #{classifer_forward.1} parent=1 // pred_check
      _
    $region3: #{classifer_forward.1} parent=1 // pred_check_branch
      %12 = sbr.rel (0) target = $region5
    $region4: #{classifer_forward.1} parent=1 // pred_region
      %s14 = ssub.s32 640, 640
      %15 = vsyncadd [#allocation3], %s14
      %s17 = sshll.u32 [#allocation2], 4
      %s18 = int_to_ptr.vmem [resolvable:$true] %s17
      %20 = dma.hbm_to_vmem [thread:$0]  %s0, 640, %s18, [#allocation3]
    $region5: #{classifer_forward.1} parent=1 // pred_fallthru
      _
    // Predicated region
    $region6: #{classifer_forward.1} parent=1 // pred_check
      _
    $region7: #{classifer_forward.1} parent=1 // pred_check_branch
      %22 = sbr.rel (0) target = $region9
    $region8: #{classifer_forward.1} parent=1 // pred_region
      %s24 = ssub.s32 640, 640
      %25 = vsyncadd [#allocation6], %s24
      %s27 = sshll.u32 [#allocation5], 4
      %s28 = int_to_ptr.vmem [resolvable:$true] %s27
      %30 = dma.hbm_to_vmem [thread:$0]  %s1, 640, %s28, [#allocation6]
    $region9: #{classifer_forward.1} parent=1 // pred_fallthru
      _
    // Predicated region
    $region10: #{classifer_forward.1} parent=1 // pred_check
      _
    $region11: #{classifer_forward.1} parent=1 // pred_check_branch
      %32 = sbr.rel (0) target = $region13
    $region12: #{classifer_forward.1} parent=1 // pred_region
      _
    $region13: #{classifer_forward.1} parent=1 // pred_fallthru
      _
    // Predicated region
    $region14: #{classifer_forward.1} parent=1 // pred_check
      _
    $region15: #{classifer_forward.1} parent=1 // pred_check_branch
      %34 = sbr.rel (0) target = $region17
    $region16: #{classifer_forward.1} parent=1 // pred_region
      %35 = dma.done [#allocation3], 640
    $region17: #{classifer_forward.1} parent=1 // pred_fallthru
      _
    // Predicated region
    $region18: #{classifer_forward.1} parent=1 // pred_check
      _
    $region19: #{classifer_forward.1} parent=1 // pred_check_branch
      %37 = sbr.rel (0) target = $region21
    $region20: #{classifer_forward.1} parent=1 // pred_region
      %38 = dma.done [#allocation6], 640
    $region21: #{classifer_forward.1} parent=1 // pred_fallthru
      _
    %v39 = vld [vmem:[#allocation2] sm:$0xff]
    %v40 = vld [vmem:[#allocation2 + $0x8] sm:$0xff]
    %v41 = vld [vmem:[#allocation2 + $0x10] sm:$0xff]
    %v42 = vld [vmem:[#allocation2 + $0x18] sm:$0xff]
    %v43 = vld [vmem:[#allocation2 + $0x20] sm:$0xff]
    %v44 = vld [vmem:[#allocation5] sm:$0x1f]
    %v45 = vld [vmem:[#allocation5 + $0x8] sm:$0x1f]
    %v46 = vld [vmem:[#allocation5 + $0x10] sm:$0x1f]
    %v47 = vld [vmem:[#allocation5 + $0x18] sm:$0x1f]
    %v48 = vld [vmem:[#allocation5 + $0x20] sm:$0x1f]
    %v49 = vld [vmem:[%s2] sm:$0x1]
    %v51 = vlaneseq
    %v52 = vshrl.u32 %v51, 7
    %v53 = vsub.s32 0, %v52
    %v54 = vrot.slane %v49, %v53
    %56 = vmatprep.subr.mxu0 %v45
    %57 = vmatpush1.xpose.msra.mxu0 %v44
    %58 = vmatprep.subr.mxu0 0.0
    %59 = vmatpush1.xpose.msra.mxu0 0.0
    %60 = vmatprep.subr.mxu0 0.0
    %61 = vmatpush1.xpose.msra.mxu0 0.0
    %62 = vmatprep.subr.mxu0 0.0
    %63 = vmatpush1.xpose.msra.mxu0 0.0
    %64 = vmatprep.subr.mxu0 0.0
    %65 = vmatpush1.xpose.msra.mxu0 0.0
    %66 = vmatprep.subr.mxu0 0.0
    %67 = vmatpush1.xpose.msra.mxu0 0.0
    %68 = vmatprep.subr.mxu0 0.0
    %69 = vmatpush1.xpose.msra.mxu0 0.0
    %70 = vmatprep.subr.mxu0 0.0
    %71 = vmatpush1.xpose.msra.mxu0 0.0
    %72 = vmatprep.subr.mxu0 0.0
    %73 = vmatpush1.xpose.msra.mxu0 0.0
    %74 = vmatprep.subr.mxu0 0.0
    %75 = vmatpush1.xpose.msra.mxu0 0.0
    %76 = vmatprep.subr.mxu0 0.0
    %77 = vmatpush1.xpose.msra.mxu0 0.0
    %78 = vmatprep.subr.mxu0 0.0
    %79 = vmatpush1.xpose.msra.mxu0 0.0
    %80 = vmatprep.subr.mxu0 0.0
    %81 = vmatpush1.xpose.msra.mxu0 0.0
    %82 = vmatprep.subr.mxu0 0.0
    %83 = vmatpush1.xpose.msra.mxu0 0.0
    %84 = vmatprep.subr.mxu0 0.0
    %85 = vmatpush1.xpose.msra.mxu0 0.0
    %86 = vmatprep.subr.mxu0 0.0
    %87 = vmatpush1.xpose.msra.mxu0 0.0
    %88 = vmatprep.subr.mxu0 0.0
    %89 = vmatpush1.xpose.msra.mxu0 0.0
    %90 = vmatprep.subr.mxu0 0.0
    %91 = vmatpush1.xpose.msra.mxu0 0.0
    %92 = vmatprep.subr.mxu0 0.0
    %93 = vmatpush1.xpose.msra.mxu0 0.0
    %94 = vmatprep.subr.mxu0 0.0
    %95 = vmatpush1.xpose.msra.mxu0 0.0
    %96 = vmatprep.subr.mxu0 0.0
    %97 = vmatpush1.xpose.msra.mxu0 0.0
    %98 = vmatprep.subr.mxu0 0.0
    %99 = vmatpush1.xpose.msra.mxu0 0.0
    %100 = vmatprep.subr.mxu0 0.0
    %101 = vmatpush1.xpose.msra.mxu0 0.0
    %102 = vmatprep.subr.mxu0 0.0
    %103 = vmatpush1.xpose.msra.mxu0 0.0
    %104 = vmatprep.subr.mxu0 0.0
    %105 = vmatpush1.xpose.msra.mxu0 0.0
    %106 = vmatprep.subr.mxu0 0.0
    %107 = vmatpush1.xpose.msra.mxu0 0.0
    %108 = vmatprep.subr.mxu0 0.0
    %109 = vmatpush1.xpose.msra.mxu0 0.0
    %110 = vmatprep.subr.mxu0 0.0
    %111 = vmatpush1.xpose.msra.mxu0 0.0
    %112 = vmatprep.subr.mxu0 0.0
    %113 = vmatpush1.xpose.msra.mxu0 0.0
    %114 = vmatprep.subr.mxu0 0.0
    %115 = vmatpush1.xpose.msra.mxu0 0.0
    %116 = vmatprep.subr.mxu0 0.0
    %117 = vmatpush1.xpose.msra.mxu0 0.0
    %118 = vmatprep.subr.mxu0 0.0
    %119 = vmatpush1.xpose.msra.mxu0 0.0
    %120 = vmatprep.mubr.f32.mxu0 %v40
    %121 = vmatmul.mubr.f32.gmra.mrb[0].mxu0 %v39
    %v122 = vpop.f32.mrb[0].mxu0
    %v123 = vadd.f32 %v54, %v122
    %v124 = vpop.f32.mrb[0].mxu0
    %125 = vdwg.mxu0
    %126 = vmatprep.subr.mxu0 %v47
    %127 = vmatpush1.xpose.msra.mxu0 %v46
    %128 = vmatprep.subr.mxu0 0.0
    %129 = vmatpush1.xpose.msra.mxu0 0.0
    %130 = vmatprep.subr.mxu0 0.0
    %131 = vmatpush1.xpose.msra.mxu0 0.0
    %132 = vmatprep.subr.mxu0 0.0
    %133 = vmatpush1.xpose.msra.mxu0 0.0
    %134 = vmatprep.subr.mxu0 0.0
    %135 = vmatpush1.xpose.msra.mxu0 0.0
    %136 = vmatprep.subr.mxu0 0.0
    %137 = vmatpush1.xpose.msra.mxu0 0.0
    %138 = vmatprep.subr.mxu0 0.0
    %139 = vmatpush1.xpose.msra.mxu0 0.0
    %140 = vmatprep.subr.mxu0 0.0
    %141 = vmatpush1.xpose.msra.mxu0 0.0
    %142 = vmatprep.subr.mxu0 0.0
    %143 = vmatpush1.xpose.msra.mxu0 0.0
    %144 = vmatprep.subr.mxu0 0.0
    %145 = vmatpush1.xpose.msra.mxu0 0.0
    %146 = vmatprep.subr.mxu0 0.0
    %147 = vmatpush1.xpose.msra.mxu0 0.0
    %148 = vmatprep.subr.mxu0 0.0
    %149 = vmatpush1.xpose.msra.mxu0 0.0
    %150 = vmatprep.subr.mxu0 0.0
    %151 = vmatpush1.xpose.msra.mxu0 0.0
    %152 = vmatprep.subr.mxu0 0.0
    %153 = vmatpush1.xpose.msra.mxu0 0.0
    %154 = vmatprep.subr.mxu0 0.0
    %155 = vmatpush1.xpose.msra.mxu0 0.0
    %156 = vmatprep.subr.mxu0 0.0
    %157 = vmatpush1.xpose.msra.mxu0 0.0
    %158 = vmatprep.subr.mxu0 0.0
    %159 = vmatpush1.xpose.msra.mxu0 0.0
    %160 = vmatprep.subr.mxu0 0.0
    %161 = vmatpush1.xpose.msra.mxu0 0.0
    %162 = vmatprep.subr.mxu0 0.0
    %163 = vmatpush1.xpose.msra.mxu0 0.0
    %164 = vmatprep.subr.mxu0 0.0
    %165 = vmatpush1.xpose.msra.mxu0 0.0
    %166 = vmatprep.subr.mxu0 0.0
    %167 = vmatpush1.xpose.msra.mxu0 0.0
    %168 = vmatprep.subr.mxu0 0.0
    %169 = vmatpush1.xpose.msra.mxu0 0.0
    %170 = vmatprep.subr.mxu0 0.0
    %171 = vmatpush1.xpose.msra.mxu0 0.0
    %172 = vmatprep.subr.mxu0 0.0
    %173 = vmatpush1.xpose.msra.mxu0 0.0
    %174 = vmatprep.subr.mxu0 0.0
    %175 = vmatpush1.xpose.msra.mxu0 0.0
    %176 = vmatprep.subr.mxu0 0.0
    %177 = vmatpush1.xpose.msra.mxu0 0.0
    %178 = vmatprep.subr.mxu0 0.0
    %179 = vmatpush1.xpose.msra.mxu0 0.0
    %180 = vmatprep.subr.mxu0 0.0
    %181 = vmatpush1.xpose.msra.mxu0 0.0
    %182 = vmatprep.subr.mxu0 0.0
    %183 = vmatpush1.xpose.msra.mxu0 0.0
    %184 = vmatprep.subr.mxu0 0.0
    %185 = vmatpush1.xpose.msra.mxu0 0.0
    %186 = vmatprep.subr.mxu0 0.0
    %187 = vmatpush1.xpose.msra.mxu0 0.0
    %188 = vmatprep.subr.mxu0 0.0
    %189 = vmatpush1.xpose.msra.mxu0 0.0
    %190 = vmatprep.mubr.f32.mxu0 %v42
    %191 = vmatmul.mubr.f32.gmra.mrb[0].mxu0 %v41
    %v192 = vpop.f32.mrb[0].mxu0
    %v193 = vadd.f32 %v123, %v192
    %v194 = vpop.f32.mrb[0].mxu0
    %195 = vdwg.mxu0
    %196 = vmatprep.subr.mxu0 0.0
    %197 = vmatpush1.xpose.msra.mxu0 %v48
    %198 = vmatprep.subr.mxu0 0.0
    %199 = vmatpush1.xpose.msra.mxu0 0.0
    %200 = vmatprep.subr.mxu0 0.0
    %201 = vmatpush1.xpose.msra.mxu0 0.0
    %202 = vmatprep.subr.mxu0 0.0
    %203 = vmatpush1.xpose.msra.mxu0 0.0
    %204 = vmatprep.subr.mxu0 0.0
    %205 = vmatpush1.xpose.msra.mxu0 0.0
    %206 = vmatprep.subr.mxu0 0.0
    %207 = vmatpush1.xpose.msra.mxu0 0.0
    %208 = vmatprep.subr.mxu0 0.0
    %209 = vmatpush1.xpose.msra.mxu0 0.0
    %210 = vmatprep.subr.mxu0 0.0
    %211 = vmatpush1.xpose.msra.mxu0 0.0
    %212 = vmatprep.subr.mxu0 0.0
    %213 = vmatpush1.xpose.msra.mxu0 0.0
    %214 = vmatprep.subr.mxu0 0.0
    %215 = vmatpush1.xpose.msra.mxu0 0.0
    %216 = vmatprep.subr.mxu0 0.0
    %217 = vmatpush1.xpose.msra.mxu0 0.0
    %218 = vmatprep.subr.mxu0 0.0
    %219 = vmatpush1.xpose.msra.mxu0 0.0
    %220 = vmatprep.subr.mxu0 0.0
    %221 = vmatpush1.xpose.msra.mxu0 0.0
    %222 = vmatprep.subr.mxu0 0.0
    %223 = vmatpush1.xpose.msra.mxu0 0.0
    %224 = vmatprep.subr.mxu0 0.0
    %225 = vmatpush1.xpose.msra.mxu0 0.0
    %226 = vmatprep.subr.mxu0 0.0
    %227 = vmatpush1.xpose.msra.mxu0 0.0
    %228 = vmatprep.subr.mxu0 0.0
    %229 = vmatpush1.xpose.msra.mxu0 0.0
    %230 = vmatprep.subr.mxu0 0.0
    %231 = vmatpush1.xpose.msra.mxu0 0.0
    %232 = vmatprep.subr.mxu0 0.0
    %233 = vmatpush1.xpose.msra.mxu0 0.0
    %234 = vmatprep.subr.mxu0 0.0
    %235 = vmatpush1.xpose.msra.mxu0 0.0
    %236 = vmatprep.subr.mxu0 0.0
    %237 = vmatpush1.xpose.msra.mxu0 0.0
    %238 = vmatprep.subr.mxu0 0.0
    %239 = vmatpush1.xpose.msra.mxu0 0.0
    %240 = vmatprep.subr.mxu0 0.0
    %241 = vmatpush1.xpose.msra.mxu0 0.0
    %242 = vmatprep.subr.mxu0 0.0
    %243 = vmatpush1.xpose.msra.mxu0 0.0
    %244 = vmatprep.subr.mxu0 0.0
    %245 = vmatpush1.xpose.msra.mxu0 0.0
    %246 = vmatprep.subr.mxu0 0.0
    %247 = vmatpush1.xpose.msra.mxu0 0.0
    %248 = vmatprep.subr.mxu0 0.0
    %249 = vmatpush1.xpose.msra.mxu0 0.0
    %250 = vmatprep.subr.mxu0 0.0
    %251 = vmatpush1.xpose.msra.mxu0 0.0
    %252 = vmatprep.subr.mxu0 0.0
    %253 = vmatpush1.xpose.msra.mxu0 0.0
    %254 = vmatprep.subr.mxu0 0.0
    %255 = vmatpush1.xpose.msra.mxu0 0.0
    %256 = vmatprep.subr.mxu0 0.0
    %257 = vmatpush1.xpose.msra.mxu0 0.0
    %258 = vmatprep.subr.mxu0 0.0
    %259 = vmatpush1.xpose.msra.mxu0 0.0
    %260 = vmatprep.mubr.f32.mxu0 0.0
    %261 = vmatmul.mubr.f32.gmra.mrb[0].mxu0 %v43
    %v262 = vpop.f32.mrb[0].mxu0
    %v263 = vadd.f32 %v193, %v262
    %v264 = vpop.f32.mrb[0].mxu0
    %265 = vdwg.mxu0
    %vm266 = vcmask 39936
    %267 = vst.msk [vmem:[#allocation7] sm:$0xff] %vm266, %v263
    // Predicated region
    $region22: #{classifer_forward.1} parent=1 // pred_check
      _
    $region23: #{classifer_forward.1} parent=1 // pred_check_branch
      %269 = sbr.rel (0) target = $region25
    $region24: #{classifer_forward.1} parent=1 // pred_region
      %s271 = ssub.s32 128, 128
      %272 = vsyncadd [#allocation4], %s271
      %s274 = sshll.u32 [#allocation7], 4
      %s275 = int_to_ptr.vmem [resolvable:$true] %s274
      %277 = dma.vmem_to_hbm [thread:$0]  %s275, 128, %s3, [#allocation4]
    $region25: #{classifer_forward.1} parent=1 // pred_fallthru
      _
    // Predicated region
    $region26: #{classifer_forward.1} parent=1 // pred_check
      _
    $region27: #{classifer_forward.1} parent=1 // pred_check_branch
      %279 = sbr.rel (0) target = $region29
    $region28: #{classifer_forward.1} parent=1 // pred_region
      %280 = dma.done [#allocation4], 128
    $region29: #{classifer_forward.1} parent=1 // pred_fallthru
      _
    %281 = vsyncpa [#allocation3], 1
    %282 = vsyncpa [#allocation6], 1
    %283 = vsyncpa [#allocation4], 1

</llo_original>
